<compile_context>
chip_gen: v5e
topology: v5e:2x2
jax: 0.10.0
libtpu: 0.0.40
codegen_flags: <defaults>
</compile_context>

<pallas_src>
import functools

import jax
import jax.numpy as jnp
from jax import lax
from jax.experimental import pallas as pl
from jax.experimental.pallas import tpu as pltpu


def _topk_double_kernel(x_ref, vals_ref, idx_ref, *, k, out_w):
    # Hot path: x + x, then k rounds of (max, lowest-index argmax, mask-out)
    # over the lane axis.  Results accumulate into lane-dense (rows, out_w)
    # slabs so the store is a single unmasked vst per output per grid step.
    x = x_ref[...]
    work = (x + x).astype(jnp.float32)            # tensor = tensor + tensor
    rows_blk, cols = work.shape
    neg_inf = jnp.float32(-jnp.inf)

    col_iota = lax.broadcasted_iota(jnp.int32, (rows_blk, cols), 1)
    out_iota = lax.broadcasted_iota(jnp.int32, (rows_blk, out_w), 1)

    # NaN ranks as largest with a valid index (matches torch.topk).
    key_base = jnp.where(jnp.isnan(work), jnp.float32(jnp.inf), work)

    selected = jnp.zeros((rows_blk, cols), dtype=jnp.bool_)
    vals_acc = jnp.full((rows_blk, out_w), neg_inf, dtype=jnp.float32)
    idx_acc = jnp.full((rows_blk, out_w), -1, dtype=jnp.int32)

    for r in range(k):                            # k is small & static
        key = jnp.where(selected, neg_inf, key_base)
        m = jnp.max(key, axis=-1, keepdims=True)                  # (rows, 1)
        cand = (key == m) & jnp.logical_not(selected)
        # lowest index wins ties (torch.topk behavior)
        idx = jnp.min(jnp.where(cand, col_iota, cols),
                      axis=-1, keepdims=True)                     # (rows, 1)
        chosen = col_iota == idx
        # gather the actual value (propagates NaN / -inf correctly)
        val = jnp.max(jnp.where(chosen, work, neg_inf),
                      axis=-1, keepdims=True)                     # (rows, 1)
        vals_acc = jnp.where(out_iota == r, val, vals_acc)
        idx_acc = jnp.where(out_iota == r, idx, idx_acc)
        selected = selected | chosen

    vals_ref[...] = vals_acc.astype(vals_ref.dtype)
    idx_ref[...] = idx_acc


def _pick_block_rows(rows, cols, itemsize):
    """Largest row tile (multiple of 8) that keeps the input tile ~4 MiB.

    4 MiB amortizes the ~0.35 us/step pipeline overhead (near HBM roofline)
    while staying well inside v7x's 64 MiB VMEM with double buffering and the
    traced `work` intermediates; v5e/v6e (128 MiB VMEM) have extra headroom.
    """
    rows8 = ((rows + 7) // 8) * 8
    budget = 4 * 1024 * 1024
    br = max(8, min(512, budget // max(1, cols * itemsize)))
    br = (br // 8) * 8
    br = min(br, rows8)
    # Prefer >=2 grid steps (when rows allow) so v7x's two TensorCores both
    # get work on the "parallel" row axis.
    while br > 8 and ((rows + br - 1) // br) < 2:
        br = max(8, ((br // 2) // 8) * 8)
    return br


def simple_topk_model(x, count):
    """Pallas equivalent of SimpleTopkModel(count).forward(x) for 2-D x."""
    rows, cols = x.shape
    assert 1 <= count <= cols, "count must be in [1, cols]"

    itemsize = jnp.dtype(x.dtype).itemsize
    block_rows = _pick_block_rows(rows, cols, itemsize)
    padded_rows = ((rows + block_rows - 1) // block_rows) * block_rows
    # Lane-dense output width (multiple of 128); slice back to `count` below.
    out_w = ((count + 127) // 128) * 128

    xp = x
    if padded_rows != rows:
        xp = jnp.pad(x, ((0, padded_rows - rows), (0, 0)))

    # Explicit scoped-VMEM budget: double-buffered input + two lane-dense
    # outputs + traced intermediates, with headroom.  Clamp to a range that is
    # safe on v7x (64 MiB physical VMEM) and never below the 32 MiB default.
    in_tile = block_rows * cols * itemsize
    out_tile = block_rows * out_w * 4 * 2         # f32 values + i32 indices
    vmem_limit = min(48 << 20,
                     max(32 << 20, 4 * in_tile + 2 * out_tile + (4 << 20)))

    kernel = functools.partial(_topk_double_kernel, k=count, out_w=out_w)
    vals, idx = pl.pallas_call(
        kernel,
        out_shape=(
            jax.ShapeDtypeStruct((padded_rows, out_w), x.dtype),   # values
            jax.ShapeDtypeStruct((padded_rows, out_w), jnp.int32),  # indices
        ),
        grid=(padded_rows // block_rows,),
        in_specs=[pl.BlockSpec((block_rows, cols), lambda i: (i, 0))],
        out_specs=(
            pl.BlockSpec((block_rows, out_w), lambda i: (i, 0)),
            pl.BlockSpec((block_rows, out_w), lambda i: (i, 0)),
        ),
        compiler_params=pltpu.CompilerParams(
            dimension_semantics=("parallel",),
            vmem_limit_bytes=vmem_limit,
        ),
    )(xp)

    return vals[:rows, :count], idx[:rows, :count]


if __name__ == "__main__":
    key = jax.random.PRNGKey(0)
    rows, cols, count = 20, 32, 3          # small, consistent with the module
    x = jax.random.normal(key, (rows, cols), dtype=jnp.float32)

    values, indices = simple_topk_model(x, count)
    values = jax.block_until_ready(values)
    indices = jax.block_until_ready(indices)

    # Reference check against jax.lax.top_k on (x + x).
    ref_vals, ref_idx = lax.top_k(x + x, count)
    assert values.shape == (rows, count) and indices.shape == (rows, count)
    assert jnp.allclose(values, ref_vals, atol=1e-6), "values mismatch"
    assert jnp.array_equal(indices, ref_idx.astype(jnp.int32)), "indices mismatch"

    print("KERNEL_OK")
</pallas_src>

<mosaic_0001>
module attributes {stable_mosaic.version = 11 : i64} {
  func.func @_topk_double_kernel(%arg0: i32, %arg1: memref<8x32xf32, #tpu.memory_space<vmem>>, %arg2: memref<8x128xf32, #tpu.memory_space<vmem>>, %arg3: memref<8x128xi32, #tpu.memory_space<vmem>>) attributes {dimension_semantics = [#tpu.dimension_semantics<parallel>], iteration_bounds = array<i64: 3>, scalar_prefetch = 0 : i64, scratch_operands = 0 : i64, tpu.core_type = #tpu.core_type<tc>, window_params = [{transform_indices = @transform_0, window_bounds = array<i64: 8, 32>}, {transform_indices = @transform_1, window_bounds = array<i64: 8, 128>}, {transform_indices = @transform_2, window_bounds = array<i64: 8, 128>}]} {
    %c0 = arith.constant 0 : index
    %c0_0 = arith.constant 0 : index
    %0 = vector.load %arg1[%c0, %c0_0] : memref<8x32xf32, #tpu.memory_space<vmem>>, vector<8x32xf32>
    %1 = arith.addf %0, %0 : vector<8x32xf32>
    %2 = tpu.iota {dimensions = array<i32: 1>} : vector<8x32xi32>
    %3 = tpu.iota {dimensions = array<i32: 1>} : vector<8x128xi32>
    %4 = arith.cmpf one, %1, %1 : vector<8x32xf32>
    %cst = arith.constant 0x7F800000 : f32
    %5 = vector.broadcast %cst : f32 to vector<8x32xf32>
    %6 = arith.select %4, %5, %1 : vector<8x32xi1>, vector<8x32xf32>
    %false = arith.constant false
    %7 = vector.broadcast %false : i1 to vector<8x32xi1>
    %cst_1 = arith.constant 0xFF800000 : f32
    %8 = vector.broadcast %cst_1 : f32 to vector<8x128xf32>
    %c-1_i32 = arith.constant -1 : i32
    %9 = vector.broadcast %c-1_i32 : i32 to vector<8x128xi32>
    %cst_2 = arith.constant 0xFF800000 : f32
    %10 = vector.broadcast %cst_2 : f32 to vector<8x32xf32>
    %11 = arith.select %7, %10, %6 : vector<8x32xi1>, vector<8x32xf32>
    %cst_3 = arith.constant dense<0xFF800000> : vector<8xf32>
    %12 = vector.multi_reduction <maximumf>, %11, %cst_3 [1] : vector<8x32xf32> to vector<8xf32>
    %13 = vector.shape_cast %12 : vector<8xf32> to vector<8x1xf32>
    %14 = vector.broadcast %13 : vector<8x1xf32> to vector<8x32xf32>
    %15 = arith.cmpf oeq, %11, %14 : vector<8x32xf32>
    %cst_4 = arith.constant dense<true> : vector<8x32xi1>
    %16 = arith.xori %7, %cst_4 : vector<8x32xi1>
    %17 = arith.andi %15, %16 : vector<8x32xi1>
    %c32_i32 = arith.constant 32 : i32
    %18 = vector.broadcast %c32_i32 : i32 to vector<8x32xi32>
    %19 = arith.select %17, %2, %18 : vector<8x32xi1>, vector<8x32xi32>
    %cst_5 = arith.constant dense<2147483647> : vector<8xi32>
    %20 = vector.multi_reduction <minsi>, %19, %cst_5 [1] : vector<8x32xi32> to vector<8xi32>
    %21 = vector.shape_cast %20 : vector<8xi32> to vector<8x1xi32>
    %22 = vector.broadcast %21 : vector<8x1xi32> to vector<8x32xi32>
    %23 = arith.cmpi eq, %2, %22 : vector<8x32xi32>
    %cst_6 = arith.constant 0xFF800000 : f32
    %24 = vector.broadcast %cst_6 : f32 to vector<8x32xf32>
    %25 = arith.select %23, %1, %24 : vector<8x32xi1>, vector<8x32xf32>
    %cst_7 = arith.constant dense<0xFF800000> : vector<8xf32>
    %26 = vector.multi_reduction <maximumf>, %25, %cst_7 [1] : vector<8x32xf32> to vector<8xf32>
    %27 = vector.shape_cast %26 : vector<8xf32> to vector<8x1xf32>
    %c0_i32 = arith.constant 0 : i32
    %28 = vector.broadcast %c0_i32 : i32 to vector<8x128xi32>
    %29 = arith.cmpi eq, %3, %28 : vector<8x128xi32>
    %30 = vector.shape_cast %27 : vector<8x1xf32> to vector<8x1xf32>
    %31 = vector.broadcast %30 : vector<8x1xf32> to vector<8x128xf32>
    %32 = arith.select %29, %31, %8 : vector<8x128xi1>, vector<8x128xf32>
    %c0_i32_8 = arith.constant 0 : i32
    %33 = vector.broadcast %c0_i32_8 : i32 to vector<8x128xi32>
    %34 = arith.cmpi eq, %3, %33 : vector<8x128xi32>
    %35 = vector.shape_cast %21 : vector<8x1xi32> to vector<8x1xi32>
    %36 = vector.broadcast %35 : vector<8x1xi32> to vector<8x128xi32>
    %37 = arith.select %34, %36, %9 : vector<8x128xi1>, vector<8x128xi32>
    %38 = arith.ori %7, %23 : vector<8x32xi1>
    %cst_9 = arith.constant 0xFF800000 : f32
    %39 = vector.broadcast %cst_9 : f32 to vector<8x32xf32>
    %40 = arith.select %38, %39, %6 : vector<8x32xi1>, vector<8x32xf32>
    %cst_10 = arith.constant dense<0xFF800000> : vector<8xf32>
    %41 = vector.multi_reduction <maximumf>, %40, %cst_10 [1] : vector<8x32xf32> to vector<8xf32>
    %42 = vector.shape_cast %41 : vector<8xf32> to vector<8x1xf32>
    %43 = vector.broadcast %42 : vector<8x1xf32> to vector<8x32xf32>
    %44 = arith.cmpf oeq, %40, %43 : vector<8x32xf32>
    %cst_11 = arith.constant dense<true> : vector<8x32xi1>
    %45 = arith.xori %38, %cst_11 : vector<8x32xi1>
    %46 = arith.andi %44, %45 : vector<8x32xi1>
    %c32_i32_12 = arith.constant 32 : i32
    %47 = vector.broadcast %c32_i32_12 : i32 to vector<8x32xi32>
    %48 = arith.select %46, %2, %47 : vector<8x32xi1>, vector<8x32xi32>
    %cst_13 = arith.constant dense<2147483647> : vector<8xi32>
    %49 = vector.multi_reduction <minsi>, %48, %cst_13 [1] : vector<8x32xi32> to vector<8xi32>
    %50 = vector.shape_cast %49 : vector<8xi32> to vector<8x1xi32>
    %51 = vector.broadcast %50 : vector<8x1xi32> to vector<8x32xi32>
    %52 = arith.cmpi eq, %2, %51 : vector<8x32xi32>
    %cst_14 = arith.constant 0xFF800000 : f32
    %53 = vector.broadcast %cst_14 : f32 to vector<8x32xf32>
    %54 = arith.select %52, %1, %53 : vector<8x32xi1>, vector<8x32xf32>
    %cst_15 = arith.constant dense<0xFF800000> : vector<8xf32>
    %55 = vector.multi_reduction <maximumf>, %54, %cst_15 [1] : vector<8x32xf32> to vector<8xf32>
    %56 = vector.shape_cast %55 : vector<8xf32> to vector<8x1xf32>
    %c1_i32 = arith.constant 1 : i32
    %57 = vector.broadcast %c1_i32 : i32 to vector<8x128xi32>
    %58 = arith.cmpi eq, %3, %57 : vector<8x128xi32>
    %59 = vector.shape_cast %56 : vector<8x1xf32> to vector<8x1xf32>
    %60 = vector.broadcast %59 : vector<8x1xf32> to vector<8x128xf32>
    %61 = arith.select %58, %60, %32 : vector<8x128xi1>, vector<8x128xf32>
    %c1_i32_16 = arith.constant 1 : i32
    %62 = vector.broadcast %c1_i32_16 : i32 to vector<8x128xi32>
    %63 = arith.cmpi eq, %3, %62 : vector<8x128xi32>
    %64 = vector.shape_cast %50 : vector<8x1xi32> to vector<8x1xi32>
    %65 = vector.broadcast %64 : vector<8x1xi32> to vector<8x128xi32>
    %66 = arith.select %63, %65, %37 : vector<8x128xi1>, vector<8x128xi32>
    %67 = arith.ori %38, %52 : vector<8x32xi1>
    %cst_17 = arith.constant 0xFF800000 : f32
    %68 = vector.broadcast %cst_17 : f32 to vector<8x32xf32>
    %69 = arith.select %67, %68, %6 : vector<8x32xi1>, vector<8x32xf32>
    %cst_18 = arith.constant dense<0xFF800000> : vector<8xf32>
    %70 = vector.multi_reduction <maximumf>, %69, %cst_18 [1] : vector<8x32xf32> to vector<8xf32>
    %71 = vector.shape_cast %70 : vector<8xf32> to vector<8x1xf32>
    %72 = vector.broadcast %71 : vector<8x1xf32> to vector<8x32xf32>
    %73 = arith.cmpf oeq, %69, %72 : vector<8x32xf32>
    %cst_19 = arith.constant dense<true> : vector<8x32xi1>
    %74 = arith.xori %67, %cst_19 : vector<8x32xi1>
    %75 = arith.andi %73, %74 : vector<8x32xi1>
    %c32_i32_20 = arith.constant 32 : i32
    %76 = vector.broadcast %c32_i32_20 : i32 to vector<8x32xi32>
    %77 = arith.select %75, %2, %76 : vector<8x32xi1>, vector<8x32xi32>
    %cst_21 = arith.constant dense<2147483647> : vector<8xi32>
    %78 = vector.multi_reduction <minsi>, %77, %cst_21 [1] : vector<8x32xi32> to vector<8xi32>
    %79 = vector.shape_cast %78 : vector<8xi32> to vector<8x1xi32>
    %80 = vector.broadcast %79 : vector<8x1xi32> to vector<8x32xi32>
    %81 = arith.cmpi eq, %2, %80 : vector<8x32xi32>
    %cst_22 = arith.constant 0xFF800000 : f32
    %82 = vector.broadcast %cst_22 : f32 to vector<8x32xf32>
    %83 = arith.select %81, %1, %82 : vector<8x32xi1>, vector<8x32xf32>
    %cst_23 = arith.constant dense<0xFF800000> : vector<8xf32>
    %84 = vector.multi_reduction <maximumf>, %83, %cst_23 [1] : vector<8x32xf32> to vector<8xf32>
    %85 = vector.shape_cast %84 : vector<8xf32> to vector<8x1xf32>
    %c2_i32 = arith.constant 2 : i32
    %86 = vector.broadcast %c2_i32 : i32 to vector<8x128xi32>
    %87 = arith.cmpi eq, %3, %86 : vector<8x128xi32>
    %88 = vector.shape_cast %85 : vector<8x1xf32> to vector<8x1xf32>
    %89 = vector.broadcast %88 : vector<8x1xf32> to vector<8x128xf32>
    %90 = arith.select %87, %89, %61 : vector<8x128xi1>, vector<8x128xf32>
    %c2_i32_24 = arith.constant 2 : i32
    %91 = vector.broadcast %c2_i32_24 : i32 to vector<8x128xi32>
    %92 = arith.cmpi eq, %3, %91 : vector<8x128xi32>
    %93 = vector.shape_cast %79 : vector<8x1xi32> to vector<8x1xi32>
    %94 = vector.broadcast %93 : vector<8x1xi32> to vector<8x128xi32>
    %95 = arith.select %92, %94, %66 : vector<8x128xi1>, vector<8x128xi32>
    %c0_25 = arith.constant 0 : index
    %c0_26 = arith.constant 0 : index
    %96 = vector.load %arg2[%c0_25, %c0_26] : memref<8x128xf32, #tpu.memory_space<vmem>>, vector<8x128xf32>
    tpu.vector_store %arg2[%c0_25, %c0_26], %90 {strides = array<i32>} : memref<8x128xf32, #tpu.memory_space<vmem>>, vector<8x128xf32>,
    %c0_27 = arith.constant 0 : index
    %c0_28 = arith.constant 0 : index
    %97 = vector.load %arg3[%c0_27, %c0_28] : memref<8x128xi32, #tpu.memory_space<vmem>>, vector<8x128xi32>
    tpu.vector_store %arg3[%c0_27, %c0_28], %95 {strides = array<i32>} : memref<8x128xi32, #tpu.memory_space<vmem>>, vector<8x128xi32>,
    return
  }
  func.func @transform_0(%arg0: i32) -> (i32, i32) {
    %c0_i32 = arith.constant 0 : i32
    %c0_i32_0 = arith.constant 0 : i32
    return %arg0, %c0_i32 : i32, i32
  }
  func.func @transform_1(%arg0: i32) -> (i32, i32) {
    %c0_i32 = arith.constant 0 : i32
    %c0_i32_0 = arith.constant 0 : i32
    return %arg0, %c0_i32 : i32, i32
  }
  func.func @transform_2(%arg0: i32) -> (i32, i32) {
    %c0_i32 = arith.constant 0 : i32
    %c0_i32_0 = arith.constant 0 : i32
    return %arg0, %c0_i32 : i32, i32
  }
}

</mosaic_0001>

<llo_original>
// kernel: tpu_custom_call.1
$region0: #{tpu_custom_call.1}
  #allocation0 [shape = 'u32[]', space=smem, size = 0x4, offset = 0x4, fixed_abs, tag = 'smem constant byte address 0x4 - core index']
  #allocation1 [shape = 'u32[72,128]{1,0:T(1,128)}', space=vmem, size = 0x9000, scoped, tag = 'internal scratch']
  %s0 = inlined_call_operand.hbm [shape: f32[24,32], index: 0, kind: input, shape index: {}]
  %s1 = inlined_call_operand.hbm [shape: f32[24,128], index: 1, kind: output, shape index: {0}]
  %s2 = inlined_call_operand.hbm [shape: s32[24,128], index: 2, kind: output, shape index: {1}]
  %3 = xla_tuple %s1, %s2
  %s4 = sld [smem:[#allocation0]]
  $region49: #{tpu_custom_call.1} parent=0
    _
  %s6 = ssub.s32 1, %s4
  %s7 = scalar_select 0, %s6, %s4
  $region1: #{tpu_custom_call.1} parent=0
    #allocation2 [shape = 'u8[8192]{0}', space=vmem, size = 0x2000, scoped, tag = 'input window, operand 0']
    #allocation3 [shape = 's32[2]{0}', space=sflag, size = 0x8, scoped, tag = 'scoped memory for tpu_custom_call.1']
    #allocation4 [shape = 's32[2]{0}', space=sflag, size = 0x8, scoped, tag = 'scoped memory for tpu_custom_call.1']
    #allocation5 [shape = 'u8[8192]{0}', space=vmem, size = 0x2000, scoped, tag = 'output window, operand 0']
    #allocation6 [shape = 'u8[8192]{0}', space=vmem, size = 0x2000, scoped, tag = 'output window, operand 1']
    #allocation7 [shape = 's32[2]{0}', space=sflag, size = 0x8, scoped, tag = 'scoped memory for tpu_custom_call.1']
    %8 = vsyncpa [#allocation3], 0
    %s9 = scalar_lea.sflag [#allocation3], 1
    %10 = vsyncpa %s9, 0
    %11 = vsyncpa [#allocation4], 0
    %s12 = scalar_lea.sflag [#allocation4], 1
    %13 = vsyncpa %s12, 0
    %14 = vsyncpa [#allocation7], 0
    %s15 = scalar_lea.sflag [#allocation7], 1
    %16 = vsyncpa %s15, 0
    loop: start=0, step=1, limit=5
    $region2: #{tpu_custom_call.1} parent=1 // loop_pre_header
      _
    $region3: #{tpu_custom_call.1} parent=1 // loop_header
      %s18 = sphi 0, %s22
      %p19 = scmp.ge.s32.totalorder %s18, 5
      %s28 = sphi 0, %s30
      %s31 = sphi 0, %s28
      %s32 = sphi 0, %s31
      %s48 = sphi 0, %s32
      %s54 = sphi 0, %s56
      %s57 = sphi 0, %s54
      %s58 = sphi 0, %s57
      %s74 = sphi 0, %s58
      %s80 = sphi 0, %s82
      %s83 = sphi 0, %s80
      %s84 = sphi 0, %s83
      %s100 = sphi 0, %s84
    $region4: #{tpu_custom_call.1} parent=1 // loop_header_branch
      %21 = sbr.rel (%p19) target = $region8
    $region5: #{tpu_custom_call.1} parent=1 // loop_body
      %s23 = ssub.s32 %s18, 1
      %s24 = ssub.s32 %s18, 2
      %s25 = sadd.s32 %s18, 1
      %s26 = ssub.s32 %s18, %s25
      %p27 = scmp.eq.s32.totalorder %s26, 0
      %s29 = sadd.s32 %s28, 1
      %s30 = scalar_select %p27, %s28, %s29
      %p33 = pneg %p27
      %p34 = scmp.eq.s32.totalorder %s18, 2
      %p35 = por %p33, %p34
      %p36 = scmp.ne.s32.totalorder %s28, %s31
      %p37 = scmp.eq.s32.totalorder %s18, 0
      %p38 = por %p36, %p37
      %p39 = scmp.ne.s32.totalorder %s28, %s31
      %p40 = scmp.eq.s32.totalorder %s23, 2
      %p41 = por %p39, %p40
      %p42 = scmp.ne.s32.totalorder %s31, %s32
      %p43 = scmp.eq.s32.totalorder %s23, 0
      %p44 = por %p42, %p43
      %p45 = scmp.ne.s32.totalorder %s31, %s32
      %p46 = scmp.eq.s32.totalorder %s24, 2
      %p47 = por %p45, %p46
      %p49 = scmp.ne.s32.totalorder %s32, %s48
      %p50 = scmp.eq.s32.totalorder %s24, 0
      %p51 = por %p49, %p50
      %s52 = ssub.s32 %s18, %s25
      %p53 = scmp.eq.s32.totalorder %s52, 0
      %s55 = sadd.s32 %s54, 1
      %s56 = scalar_select %p53, %s54, %s55
      %p59 = pneg %p53
      %p60 = scmp.eq.s32.totalorder %s18, 2
      %p61 = por %p59, %p60
      %p62 = scmp.ne.s32.totalorder %s54, %s57
      %p63 = scmp.eq.s32.totalorder %s18, 0
      %p64 = por %p62, %p63
      %p65 = scmp.ne.s32.totalorder %s54, %s57
      %p66 = scmp.eq.s32.totalorder %s23, 2
      %p67 = por %p65, %p66
      %p68 = scmp.ne.s32.totalorder %s57, %s58
      %p69 = scmp.eq.s32.totalorder %s23, 0
      %p70 = por %p68, %p69
      %p71 = scmp.ne.s32.totalorder %s57, %s58
      %p72 = scmp.eq.s32.totalorder %s24, 2
      %p73 = por %p71, %p72
      %p75 = scmp.ne.s32.totalorder %s58, %s74
      %p76 = scmp.eq.s32.totalorder %s24, 0
      %p77 = por %p75, %p76
      %s78 = ssub.s32 %s18, %s25
      %p79 = scmp.eq.s32.totalorder %s78, 0
      %s81 = sadd.s32 %s80, 1
      %s82 = scalar_select %p79, %s80, %s81
      %p85 = pneg %p79
      %p86 = scmp.eq.s32.totalorder %s18, 2
      %p87 = por %p85, %p86
      %p88 = scmp.ne.s32.totalorder %s80, %s83
      %p89 = scmp.eq.s32.totalorder %s18, 0
      %p90 = por %p88, %p89
      %p91 = scmp.ne.s32.totalorder %s80, %s83
      %p92 = scmp.eq.s32.totalorder %s23, 2
      %p93 = por %p91, %p92
      %p94 = scmp.ne.s32.totalorder %s83, %s84
      %p95 = scmp.eq.s32.totalorder %s23, 0
      %p96 = por %p94, %p95
      %p97 = scmp.ne.s32.totalorder %s83, %s84
      %p98 = scmp.eq.s32.totalorder %s24, 2
      %p99 = por %p97, %p98
      %p101 = scmp.ne.s32.totalorder %s84, %s100
      %p102 = scmp.eq.s32.totalorder %s24, 0
      %p103 = por %p101, %p102
      %p104 = scmp.le.s32.totalorder 1, %s18
      %p105 = scmp.lt.s32.totalorder %s18, 4
      %p106 = pnand %p104, %p105
      %p107 = pneg %p106
      // Predicated region
      $region9: #{tpu_custom_call.1} parent=5 // pred_check
        _
      $region10: #{tpu_custom_call.1} parent=5 // pred_check_branch
        %109 = sbr.rel (%p106) target = $region12
      $region11: #{tpu_custom_call.1} parent=5 // pred_region
        %s110 = ssub.s32 %s18, 1
      $region12: #{tpu_custom_call.1} parent=5 // pred_fallthru
        _
      %p111 = scmp.lt.s32.totalorder %s18, 3
      // Predicated region
      $region13: #{tpu_custom_call.1} parent=5 // pred_check
        %p112 = pneg %p111
      $region14: #{tpu_custom_call.1} parent=5 // pred_check_branch
        %114 = sbr.rel (%p112) target = $region16
      $region15: #{tpu_custom_call.1} parent=5 // pred_region
        // Predicated region
        $region17: #{tpu_custom_call.1} parent=15 // pred_check
          %p115 = pneg %p38
        $region18: #{tpu_custom_call.1} parent=15 // pred_check_branch
          %117 = sbr.rel (%p115) target = $region20
        $region19: #{tpu_custom_call.1} parent=15 // pred_region
          %s118 = sand.u32 %s28, 1
          %s119 = scalar_lea.sflag [#allocation3], %s118
          %s120 = sand.u32 %s28, 1
          %s121 = smul.addr %s120, 8
          %s122 = scalar_lea.vmem [#allocation2], %s121
          %124 = vsyncadd %s119, 0
          %s125 = smul.addr %s18, 8
          %s126 = scalar_lea.hbm %s0, %s125
          %s128 = sshll.u32 %s126, 4
          %s129 = int_to_ptr.hbm [resolvable:$true] %s128
          %s130 = sshll.u32 %s122, 4
          %s131 = int_to_ptr.vmem [resolvable:$true] %s130
          %133 = dma.hbm_to_vmem [thread:$0]  %s129, 128, %s131, %s119
        $region20: #{tpu_custom_call.1} parent=15 // pred_fallthru
          _
      $region16: #{tpu_custom_call.1} parent=5 // pred_fallthru
        _
      %p134 = scmp.le.s32.totalorder 1, %s18
      %p135 = scmp.lt.s32.totalorder %s18, 4
      %p136 = pnand %p134, %p135
      %p137 = pneg %p136
      // Predicated region
      $region21: #{tpu_custom_call.1} parent=5 // pred_check
        _
      $region22: #{tpu_custom_call.1} parent=5 // pred_check_branch
        %139 = sbr.rel (%p136) target = $region24
      $region23: #{tpu_custom_call.1} parent=5 // pred_region
        %s140 = ssub.s32 %s18, 1
        %s141 = sand.u32 %s31, 1
        %s142 = scalar_lea.sflag [#allocation3], %s141
        %s143 = sand.u32 %s31, 1
        %s144 = smul.addr %s143, 8
        %s145 = scalar_lea.vmem [#allocation2], %s144
        // Predicated region
        $region25: #{tpu_custom_call.1} parent=23 // pred_check
          %p146 = pneg %p44
        $region26: #{tpu_custom_call.1} parent=23 // pred_check_branch
          %148 = sbr.rel (%p146) target = $region28
        $region27: #{tpu_custom_call.1} parent=23 // pred_region
          %150 = dma.done %s142, 128
        $region28: #{tpu_custom_call.1} parent=23 // pred_fallthru
          _
        %s151 = sand.u32 %s31, 1
        %s152 = scalar_lea.sflag [#allocation3], %s151
        %s153 = sand.u32 %s31, 1
        %s154 = smul.addr %s153, 8
        %s155 = scalar_lea.vmem [#allocation2], %s154
        %p156 = pneg %p44
        %p157 = pneg %p41
        %p158 = pneg %p70
        %p159 = pneg %p67
        %s160 = sand.u32 %s57, 1
        %s161 = scalar_lea.sflag [#allocation4], %s160
        %s162 = sand.u32 %s57, 1
        %s163 = smul.addr %s162, 8
        %s164 = scalar_lea.vmem [#allocation5], %s163
        %p165 = pneg %p96
        %p166 = pneg %p93
        %s167 = sand.u32 %s83, 1
        %s168 = scalar_lea.sflag [#allocation7], %s167
        %s169 = sand.u32 %s83, 1
        %s170 = smul.addr %s169, 8
        %s171 = scalar_lea.vmem [#allocation6], %s170
        %v172 = vld [vmem:[%s145] sm:$0xff]
        %v173 = vadd.f32 %v172, %v172
        %v174 = vlaneseq
        %v175 = vand.u32 %v174, 127
        %vm176 = vcmp.ne.f32.partialorder %v173, %v173
        %v177 = vsel %vm176, inf, %v173
        %vm178 = vcmask 261120
        %v179 = vsel %vm178, %v177, -inf
        %180 = vmax.xlane.f32.xlu0 %v179
        %v181 = vpop.xlane.xlu0 %180
        %vm182 = vcmp.eq.f32.partialorder %v177, %v181
        %v183 = vsel %vm182, %v175, 32
        %v184 = vsel %vm178, %v183, 2147483647
        %v185 = vand.u32 %v184, 65535
        %v186 = vshra.s32 %v184, 16
        %v187 = vcvt.s32.f32 %v185
        %v188 = vcvt.s32.f32 %v186
        %189 = vmin.xlane.f32.xlu0 %v188
        %v190 = vpop.xlane.xlu0 %189
        %vm191 = vcmp.eq.f32.partialorder %v188, %v190
        %v192 = vsel %vm191, %v187, inf
        %193 = vmin.xlane.f32.xlu0 %v192
        %v194 = vpop.xlane.xlu0 %193
        %v195 = vcvt.f32.s32 %v194
        %v196 = vcvt.f32.s32 %v190
        %v197 = vshll.u32 %v196, 16
        %v198 = vadd.s32 %v197, %v195
        %vm199 = vcmp.eq.s32.totalorder %v175, %v198
        %v200 = vsel %vm199, %v173, -inf
        %v201 = vsel %vm178, %v200, -inf
        %202 = vmax.xlane.f32.xlu0 %v201
        %v203 = vpop.xlane.xlu0 %202
        %vm204 = vcmp.eq.s32.totalorder %v175, 0
        %v205 = vsel %vm204, %v203, -inf
        %v206 = vsel %vm204, %v198, 4294967295
        %v207 = vsel %vm199, -inf, %v177
        %v208 = vsel %vm178, %v207, -inf
        %209 = vmax.xlane.f32.xlu0 %v208
        %v210 = vpop.xlane.xlu0 %209
        %vm211 = vcmp.eq.f32.partialorder %v207, %v210
        %vm212 = vmxor %vm199, 1
        %vm213 = vmand %vm211, %vm212
        %v214 = vsel %vm213, %v175, 32
        %v215 = vsel %vm178, %v214, 2147483647
        %v216 = vand.u32 %v215, 65535
        %v217 = vshra.s32 %v215, 16
        %v218 = vcvt.s32.f32 %v216
        %v219 = vcvt.s32.f32 %v217
        %220 = vmin.xlane.f32.xlu0 %v219
        %v221 = vpop.xlane.xlu0 %220
        %vm222 = vcmp.eq.f32.partialorder %v219, %v221
        %v223 = vsel %vm222, %v218, inf
        %224 = vmin.xlane.f32.xlu0 %v223
        %v225 = vpop.xlane.xlu0 %224
        %v226 = vcvt.f32.s32 %v225
        %v227 = vcvt.f32.s32 %v221
        %v228 = vshll.u32 %v227, 16
        %v229 = vadd.s32 %v228, %v226
        %vm230 = vcmp.eq.s32.totalorder %v175, %v229
        %v231 = vsel %vm230, %v173, -inf
        %v232 = vsel %vm178, %v231, -inf
        %233 = vmax.xlane.f32.xlu0 %v232
        %v234 = vpop.xlane.xlu0 %233
        %vm235 = vcmp.eq.s32.totalorder %v175, 1
        %v236 = vsel %vm235, %v234, %v205
        %v237 = vsel %vm235, %v229, %v206
        %vm238 = vmor %vm199, %vm230
        %v239 = vsel %vm238, -inf, %v177
        %v240 = vsel %vm178, %v239, -inf
        %241 = vmax.xlane.f32.xlu0 %v240
        %v242 = vpop.xlane.xlu0 %241
        %vm243 = vcmp.eq.f32.partialorder %v239, %v242
        %vm244 = vmxor %vm238, 1
        %vm245 = vmand %vm243, %vm244
        %v246 = vsel %vm245, %v175, 32
        %v247 = vsel %vm178, %v246, 2147483647
        %v248 = vand.u32 %v247, 65535
        %v249 = vshra.s32 %v247, 16
        %v250 = vcvt.s32.f32 %v248
        %v251 = vcvt.s32.f32 %v249
        %252 = vmin.xlane.f32.xlu0 %v251
        %v253 = vpop.xlane.xlu0 %252
        %vm254 = vcmp.eq.f32.partialorder %v251, %v253
        %v255 = vsel %vm254, %v250, inf
        %256 = vmin.xlane.f32.xlu0 %v255
        %v257 = vpop.xlane.xlu0 %256
        %v258 = vcvt.f32.s32 %v257
        %v259 = vcvt.f32.s32 %v253
        %v260 = vshll.u32 %v259, 16
        %v261 = vadd.s32 %v260, %v258
        %vm262 = vcmp.eq.s32.totalorder %v175, %v261
        %v263 = vsel %vm262, %v173, -inf
        %v264 = vsel %vm178, %v263, -inf
        %265 = vmax.xlane.f32.xlu0 %v264
        %v266 = vpop.xlane.xlu0 %265
        %vm267 = vcmp.eq.s32.totalorder %v175, 2
        %v268 = vsel %vm267, %v266, %v236
        %v269 = vsel %vm267, %v261, %v237
        %270 = vst [vmem:[%s164] sm:$0xff] %v268
        %271 = vst [vmem:[%s171] sm:$0xff] %v269
        %s272 = sand.u32 %s57, 1
        %s273 = scalar_lea.sflag [#allocation4], %s272
        %s274 = sand.u32 %s57, 1
        %s275 = smul.addr %s274, 8
        %s276 = scalar_lea.vmem [#allocation5], %s275
        %s277 = sand.u32 %s83, 1
        %s278 = scalar_lea.sflag [#allocation7], %s277
        %s279 = sand.u32 %s83, 1
        %s280 = smul.addr %s279, 8
        %s281 = scalar_lea.vmem [#allocation6], %s280
        // Predicated region
        $region29: #{tpu_custom_call.1} parent=23 // pred_check
          %p282 = pneg %p67
        $region30: #{tpu_custom_call.1} parent=23 // pred_check_branch
          %284 = sbr.rel (%p282) target = $region32
        $region31: #{tpu_custom_call.1} parent=23 // pred_region
          %286 = vsyncadd %s273, 0
          %s287 = smul.addr %s23, 8
          %s288 = scalar_lea.hbm %s1, %s287
          %s290 = sshll.u32 %s276, 4
          %s291 = int_to_ptr.vmem [resolvable:$true] %s290
          %s292 = sshll.u32 %s288, 4
          %s293 = int_to_ptr.hbm [resolvable:$true] %s292
          %295 = dma.vmem_to_hbm [thread:$0]  %s291, 128, %s293, %s273
        $region32: #{tpu_custom_call.1} parent=23 // pred_fallthru
          _
        // Predicated region
        $region33: #{tpu_custom_call.1} parent=23 // pred_check
          %p296 = pneg %p93
        $region34: #{tpu_custom_call.1} parent=23 // pred_check_branch
          %298 = sbr.rel (%p296) target = $region36
        $region35: #{tpu_custom_call.1} parent=23 // pred_region
          %300 = vsyncadd %s278, 0
          %s301 = smul.addr %s23, 8
          %s302 = scalar_lea.hbm %s2, %s301
          %s304 = sshll.u32 %s281, 4
          %s305 = int_to_ptr.vmem [resolvable:$true] %s304
          %s306 = sshll.u32 %s302, 4
          %s307 = int_to_ptr.hbm [resolvable:$true] %s306
          %309 = dma.vmem_to_hbm [thread:$0]  %s305, 128, %s307, %s278
        $region36: #{tpu_custom_call.1} parent=23 // pred_fallthru
          _
      $region24: #{tpu_custom_call.1} parent=5 // pred_fallthru
        _
      %p310 = scmp.le.s32.totalorder 2, %s18
      // Predicated region
      $region37: #{tpu_custom_call.1} parent=5 // pred_check
        %p311 = pneg %p310
      $region38: #{tpu_custom_call.1} parent=5 // pred_check_branch
        %313 = sbr.rel (%p311) target = $region40
      $region39: #{tpu_custom_call.1} parent=5 // pred_region
        %s314 = ssub.s32 %s18, 2
        // Predicated region
        $region41: #{tpu_custom_call.1} parent=39 // pred_check
          %p315 = pneg %p73
        $region42: #{tpu_custom_call.1} parent=39 // pred_check_branch
          %317 = sbr.rel (%p315) target = $region44
        $region43: #{tpu_custom_call.1} parent=39 // pred_region
          %s318 = sand.u32 %s58, 1
          %s319 = scalar_lea.sflag [#allocation4], %s318
          %s320 = sand.u32 %s58, 1
          %s321 = smul.addr %s320, 8
          %s322 = scalar_lea.vmem [#allocation5], %s321
          %324 = dma.done %s319, 128
        $region44: #{tpu_custom_call.1} parent=39 // pred_fallthru
          _
        // Predicated region
        $region45: #{tpu_custom_call.1} parent=39 // pred_check
          %p325 = pneg %p99
        $region46: #{tpu_custom_call.1} parent=39 // pred_check_branch
          %327 = sbr.rel (%p325) target = $region48
        $region47: #{tpu_custom_call.1} parent=39 // pred_region
          %s328 = sand.u32 %s84, 1
          %s329 = scalar_lea.sflag [#allocation7], %s328
          %s330 = sand.u32 %s84, 1
          %s331 = smul.addr %s330, 8
          %s332 = scalar_lea.vmem [#allocation6], %s331
          %334 = dma.done %s329, 128
        $region48: #{tpu_custom_call.1} parent=39 // pred_fallthru
          _
      $region40: #{tpu_custom_call.1} parent=5 // pred_fallthru
        _
    $region6: #{tpu_custom_call.1} parent=1 // loop_footer
      %s22 = sadd.s32 1, %s18
    $region7: #{tpu_custom_call.1} parent=1 // loop_footer_branch
      %17 = sbr.rel target = $region3
    $region8: #{tpu_custom_call.1} parent=1 // loop_exit
      _
    %335 = vsyncpa [#allocation3], 1
    %s336 = scalar_lea.sflag [#allocation3], 1
    %337 = vsyncpa %s336, 1
    %338 = vsyncpa [#allocation4], 1
    %s339 = scalar_lea.sflag [#allocation4], 1
    %340 = vsyncpa %s339, 1
    %341 = vsyncpa [#allocation7], 1
    %s342 = scalar_lea.sflag [#allocation7], 1
    %343 = vsyncpa %s342, 1

</llo_original>
